<compile_context>
chip_gen: v6e
topology: v6e:2x2x1
jax: 0.10.0
libtpu: 0.0.40
codegen_flags: <defaults>
</compile_context>

<pallas_src>
import numpy as np
import jax
import jax.numpy as jnp
from jax.experimental import pallas as pl
from jax.experimental.pallas import tpu as pltpu


def _round_up(x, m):
    return ((x + m - 1) // m) * m


def _pick_tile_and_vmem(B, F, out_dim, block_batch):
    """Choose the batch row-tile and a VMEM limit from a footprint estimate."""
    f2, f4 = F // 2, F // 4
    # Resident weights + biases (f32).
    w_bytes = 4 * (2 * F * F + F * f2 + f2 * f4 + f4 * out_dim
                   + F + f2 + f4 + out_dim)

    def footprint(tb):
        io_bytes = 2 * 4 * tb * (2 * F + out_dim)   # double-buffered in/out row tiles
        act_bytes = 4 * tb * (F + f2 + f4)          # fused intermediate activations
        return w_bytes + io_bytes + act_bytes

    tb = _round_up(min(block_batch, _round_up(B, 8)), 8)
    budget = 48 * 1024 * 1024                       # leave headroom under v7x's 64 MiB
    while tb > 8 and footprint(tb) > budget:
        tb = _round_up(tb // 2, 8)

    vmem_limit = int(min(64 * 1024 * 1024,
                         max(32 * 1024 * 1024, int(footprint(tb) * 1.25))))
    return tb, vmem_limit


def _funnel_kernel(v1_ref, v2_ref,
                   w1a_ref, w1b_ref, b1_ref,
                   w2_ref, b2_ref,
                   w3_ref, b3_ref,
                   w4_ref, b4_ref,
                   out_ref):
    # Layer 1: split-K matmul replaces concat([v1, v2], axis=1) @ W1.
    h = jnp.dot(v1_ref[...], w1a_ref[...], preferred_element_type=jnp.float32)
    h = h + jnp.dot(v2_ref[...], w1b_ref[...], preferred_element_type=jnp.float32)
    h = jnp.maximum(h + b1_ref[...], 0.0)           # bias + ReLU fused (one VPU pass)

    # Layer 2: Linear(F -> F//2) + ReLU.
    h = jnp.maximum(
        jnp.dot(h, w2_ref[...], preferred_element_type=jnp.float32) + b2_ref[...], 0.0)

    # Layer 3: Linear(F//2 -> F//4) + ReLU.
    h = jnp.maximum(
        jnp.dot(h, w3_ref[...], preferred_element_type=jnp.float32) + b3_ref[...], 0.0)

    # Layer 4: Linear(F//4 -> prod(output_dim)) + Sigmoid.
    z = jnp.dot(h, w4_ref[...], preferred_element_type=jnp.float32) + b4_ref[...]
    out_ref[...] = jax.nn.sigmoid(z).astype(out_ref.dtype)


def sigmoid_compare_funnel_net(v1, v2, params, *, block_batch=512):
    """v1, v2: [B, F] float32. params: dict of (w, b) per layer, w is [in, out], b is [1, out]."""
    B, F = v1.shape
    (w1, b1), (w2, b2), (w3, b3), (w4, b4) = (
        params["l1"], params["l2"], params["l3"], params["l4"])
    out_dim = w4.shape[1]

    # Split layer-1 weights along the contraction axis -> kills the in-kernel concat.
    w1a, w1b = w1[:F, :], w1[F:, :]

    TB, vmem_limit = _pick_tile_and_vmem(B, F, out_dim, block_batch)
    B_pad = _round_up(B, TB)
    if B_pad != B:
        pad = B_pad - B
        v1 = jnp.pad(v1, ((0, pad), (0, 0)))
        v2 = jnp.pad(v2, ((0, pad), (0, 0)))

    grid = (B_pad // TB,)

    def row_spec(shape):       # tiled over the batch axis
        return pl.BlockSpec(shape, lambda i: (i, 0))

    def resident_spec(shape):  # constant block index -> fetched once, stays in VMEM
        return pl.BlockSpec(shape, lambda i: (0, 0))

    out = pl.pallas_call(
        _funnel_kernel,
        out_shape=jax.ShapeDtypeStruct((B_pad, out_dim), jnp.float32),
        grid=grid,
        in_specs=[
            row_spec((TB, F)), row_spec((TB, F)),
            resident_spec(w1a.shape), resident_spec(w1b.shape), resident_spec(b1.shape),
            resident_spec(w2.shape), resident_spec(b2.shape),
            resident_spec(w3.shape), resident_spec(b3.shape),
            resident_spec(w4.shape), resident_spec(b4.shape),
        ],
        out_specs=row_spec((TB, out_dim)),
        compiler_params=pltpu.CompilerParams(
            dimension_semantics=("parallel",),
            vmem_limit_bytes=vmem_limit,
        ),
    )(v1, v2, w1a, w1b, b1, w2, b2, w3, b3, w4, b4)

    return out[:B] if B_pad != B else out


def init_params(key, features_size, output_dim):
    """Deterministic init mimicking nn.Linear (uniform +/- 1/sqrt(fan_in)).
    Weights stored [in, out] (transposed vs. PyTorch) so the kernel does x @ W + b."""
    out_total = int(np.prod(output_dim))
    dims = [(features_size * 2, features_size),
            (features_size, features_size // 2),
            (features_size // 2, features_size // 4),
            (features_size // 4, out_total)]
    params = {}
    for i, (fan_in, fan_out) in enumerate(dims, start=1):
        key, kw, kb = jax.random.split(key, 3)
        bound = 1.0 / np.sqrt(fan_in)
        w = jax.random.uniform(kw, (fan_in, fan_out), jnp.float32, -bound, bound)
        b = jax.random.uniform(kb, (1, fan_out), jnp.float32, -bound, bound)
        params[f"l{i}"] = (w, b)
    return params


def reference_forward(v1, v2, params):
    x = jnp.concatenate([v1, v2], axis=1)
    (w1, b1), (w2, b2), (w3, b3), (w4, b4) = (
        params["l1"], params["l2"], params["l3"], params["l4"])
    h = jnp.maximum(x @ w1 + b1, 0.0)
    h = jnp.maximum(h @ w2 + b2, 0.0)
    h = jnp.maximum(h @ w3 + b3, 0.0)
    return jax.nn.sigmoid(h @ w4 + b4)


def _check(batch, features_size, output_dim, block_batch, key):
    key, k1, k2, kp = jax.random.split(key, 4)
    v1 = jax.random.normal(k1, (batch, features_size), jnp.float32)
    v2 = jax.random.normal(k2, (batch, features_size), jnp.float32)
    params = init_params(kp, features_size, output_dim)

    out = sigmoid_compare_funnel_net(v1, v2, params, block_batch=block_batch)
    out = jax.block_until_ready(out)

    ref = reference_forward(v1, v2, params)
    np.testing.assert_allclose(np.asarray(out), np.asarray(ref), rtol=1e-5, atol=1e-5)
    return key


if __name__ == "__main__":
    key = jax.random.PRNGKey(0)

    # Case 1: ragged batch + tiny features (64->32->16->8->4); block_batch=8 so the
    # toy batch spans 2 grid steps and exercises the padded-tail path.
    key = _check(batch=13, features_size=32, output_dim=(2, 2), block_batch=8, key=key)

    # Case 2: divisible batch with lane-dense feature widths (512->256->128->64->4);
    # exercises the multi-tile resident-weight path with the default-style tiling.
    key = _check(batch=256, features_size=256, output_dim=(4,), block_batch=128, key=key)

    print("KERNEL_OK")
</pallas_src>

<mosaic_0001>
module attributes {stable_mosaic.version = 11 : i64} {
  func.func @_funnel_kernel(%arg0: i32, %arg1: memref<8x32xf32, #tpu.memory_space<vmem>>, %arg2: memref<8x32xf32, #tpu.memory_space<vmem>>, %arg3: memref<32x32xf32, #tpu.memory_space<vmem>>, %arg4: memref<32x32xf32, #tpu.memory_space<vmem>>, %arg5: memref<1x32xf32, #tpu.memory_space<vmem>>, %arg6: memref<32x16xf32, #tpu.memory_space<vmem>>, %arg7: memref<1x16xf32, #tpu.memory_space<vmem>>, %arg8: memref<16x8xf32, #tpu.memory_space<vmem>>, %arg9: memref<1x8xf32, #tpu.memory_space<vmem>>, %arg10: memref<8x4xf32, #tpu.memory_space<vmem>>, %arg11: memref<1x4xf32, #tpu.memory_space<vmem>>, %arg12: memref<8x4xf32, #tpu.memory_space<vmem>>) attributes {dimension_semantics = [#tpu.dimension_semantics<parallel>], iteration_bounds = array<i64: 2>, scalar_prefetch = 0 : i64, scratch_operands = 0 : i64, tpu.core_type = #tpu.core_type<tc>, window_params = [{transform_indices = @transform_0, window_bounds = array<i64: 8, 32>}, {transform_indices = @transform_1, window_bounds = array<i64: 8, 32>}, {pipeline_mode = #tpu.pipeline_mode<synchronous>, transform_indices = @transform_2, window_bounds = array<i64: 32, 32>}, {pipeline_mode = #tpu.pipeline_mode<synchronous>, transform_indices = @transform_3, window_bounds = array<i64: 32, 32>}, {pipeline_mode = #tpu.pipeline_mode<synchronous>, transform_indices = @transform_4, window_bounds = array<i64: 1, 32>}, {pipeline_mode = #tpu.pipeline_mode<synchronous>, transform_indices = @transform_5, window_bounds = array<i64: 32, 16>}, {pipeline_mode = #tpu.pipeline_mode<synchronous>, transform_indices = @transform_6, window_bounds = array<i64: 1, 16>}, {pipeline_mode = #tpu.pipeline_mode<synchronous>, transform_indices = @transform_7, window_bounds = array<i64: 16, 8>}, {pipeline_mode = #tpu.pipeline_mode<synchronous>, transform_indices = @transform_8, window_bounds = array<i64: 1, 8>}, {pipeline_mode = #tpu.pipeline_mode<synchronous>, transform_indices = @transform_9, window_bounds = array<i64: 8, 4>}, {pipeline_mode = #tpu.pipeline_mode<synchronous>, transform_indices = @transform_10, window_bounds = array<i64: 1, 4>}, {transform_indices = @transform_11, window_bounds = array<i64: 8, 4>}]} {
    %c0 = arith.constant 0 : index
    %c0_0 = arith.constant 0 : index
    %0 = vector.load %arg1[%c0, %c0_0] : memref<8x32xf32, #tpu.memory_space<vmem>>, vector<8x32xf32>
    %c0_1 = arith.constant 0 : index
    %c0_2 = arith.constant 0 : index
    %1 = vector.load %arg3[%c0_1, %c0_2] : memref<32x32xf32, #tpu.memory_space<vmem>>, vector<32x32xf32>
    %cst = arith.constant dense<0.000000e+00> : vector<8x32xf32>
    %2 = tpu.matmul %0, %1, %cst {dimension_numbers = #tpu.dot_dimension_numbers<[1], [0], [0], [1], [0, 0, 1, 1], [], []>} : vector<8x32xf32>, vector<32x32xf32>, vector<8x32xf32> -> vector<8x32xf32>
    %c0_3 = arith.constant 0 : index
    %c0_4 = arith.constant 0 : index
    %3 = vector.load %arg2[%c0_3, %c0_4] : memref<8x32xf32, #tpu.memory_space<vmem>>, vector<8x32xf32>
    %c0_5 = arith.constant 0 : index
    %c0_6 = arith.constant 0 : index
    %4 = vector.load %arg4[%c0_5, %c0_6] : memref<32x32xf32, #tpu.memory_space<vmem>>, vector<32x32xf32>
    %cst_7 = arith.constant dense<0.000000e+00> : vector<8x32xf32>
    %5 = tpu.matmul %3, %4, %cst_7 {dimension_numbers = #tpu.dot_dimension_numbers<[1], [0], [0], [1], [0, 0, 1, 1], [], []>} : vector<8x32xf32>, vector<32x32xf32>, vector<8x32xf32> -> vector<8x32xf32>
    %6 = arith.addf %2, %5 : vector<8x32xf32>
    %c0_8 = arith.constant 0 : index
    %c0_9 = arith.constant 0 : index
    %7 = vector.load %arg5[%c0_8, %c0_9] : memref<1x32xf32, #tpu.memory_space<vmem>>, vector<1x32xf32>
    %8 = vector.broadcast %7 : vector<1x32xf32> to vector<8x32xf32>
    %9 = arith.addf %6, %8 : vector<8x32xf32>
    %cst_10 = arith.constant 0.000000e+00 : f32
    %10 = vector.broadcast %cst_10 : f32 to vector<8x32xf32>
    %11 = arith.maximumf %9, %10 : vector<8x32xf32>
    %c0_11 = arith.constant 0 : index
    %c0_12 = arith.constant 0 : index
    %12 = vector.load %arg6[%c0_11, %c0_12] : memref<32x16xf32, #tpu.memory_space<vmem>>, vector<32x16xf32>
    %cst_13 = arith.constant dense<0.000000e+00> : vector<8x16xf32>
    %13 = tpu.matmul %11, %12, %cst_13 {dimension_numbers = #tpu.dot_dimension_numbers<[1], [0], [0], [1], [0, 0, 1, 1], [], []>} : vector<8x32xf32>, vector<32x16xf32>, vector<8x16xf32> -> vector<8x16xf32>
    %c0_14 = arith.constant 0 : index
    %c0_15 = arith.constant 0 : index
    %14 = vector.load %arg7[%c0_14, %c0_15] : memref<1x16xf32, #tpu.memory_space<vmem>>, vector<1x16xf32>
    %15 = vector.broadcast %14 : vector<1x16xf32> to vector<8x16xf32>
    %16 = arith.addf %13, %15 : vector<8x16xf32>
    %cst_16 = arith.constant 0.000000e+00 : f32
    %17 = vector.broadcast %cst_16 : f32 to vector<8x16xf32>
    %18 = arith.maximumf %16, %17 : vector<8x16xf32>
    %c0_17 = arith.constant 0 : index
    %c0_18 = arith.constant 0 : index
    %19 = vector.load %arg8[%c0_17, %c0_18] : memref<16x8xf32, #tpu.memory_space<vmem>>, vector<16x8xf32>
    %cst_19 = arith.constant dense<0.000000e+00> : vector<8x8xf32>
    %20 = tpu.matmul %18, %19, %cst_19 {dimension_numbers = #tpu.dot_dimension_numbers<[1], [0], [0], [1], [0, 0, 1, 1], [], []>} : vector<8x16xf32>, vector<16x8xf32>, vector<8x8xf32> -> vector<8x8xf32>
    %c0_20 = arith.constant 0 : index
    %c0_21 = arith.constant 0 : index
    %21 = vector.load %arg9[%c0_20, %c0_21] : memref<1x8xf32, #tpu.memory_space<vmem>>, vector<1x8xf32>
    %22 = vector.broadcast %21 : vector<1x8xf32> to vector<8x8xf32>
    %23 = arith.addf %20, %22 : vector<8x8xf32>
    %cst_22 = arith.constant 0.000000e+00 : f32
    %24 = vector.broadcast %cst_22 : f32 to vector<8x8xf32>
    %25 = arith.maximumf %23, %24 : vector<8x8xf32>
    %c0_23 = arith.constant 0 : index
    %c0_24 = arith.constant 0 : index
    %26 = vector.load %arg10[%c0_23, %c0_24] : memref<8x4xf32, #tpu.memory_space<vmem>>, vector<8x4xf32>
    %cst_25 = arith.constant dense<0.000000e+00> : vector<8x4xf32>
    %27 = tpu.matmul %25, %26, %cst_25 {dimension_numbers = #tpu.dot_dimension_numbers<[1], [0], [0], [1], [0, 0, 1, 1], [], []>} : vector<8x8xf32>, vector<8x4xf32>, vector<8x4xf32> -> vector<8x4xf32>
    %c0_26 = arith.constant 0 : index
    %c0_27 = arith.constant 0 : index
    %28 = vector.load %arg11[%c0_26, %c0_27] : memref<1x4xf32, #tpu.memory_space<vmem>>, vector<1x4xf32>
    %29 = vector.broadcast %28 : vector<1x4xf32> to vector<8x4xf32>
    %30 = arith.addf %27, %29 : vector<8x4xf32>
    %31 = arith.negf %30 : vector<8x4xf32>
    %32 = math.exp %31 : vector<8x4xf32>
    %cst_28 = arith.constant 1.000000e+00 : f32
    %33 = vector.broadcast %cst_28 : f32 to vector<8x4xf32>
    %34 = arith.addf %33, %32 : vector<8x4xf32>
    %35 = arith.divf %33, %34 : vector<8x4xf32>
    %c0_29 = arith.constant 0 : index
    %c0_30 = arith.constant 0 : index
    %36 = vector.load %arg12[%c0_29, %c0_30] : memref<8x4xf32, #tpu.memory_space<vmem>>, vector<8x4xf32>
    tpu.vector_store %arg12[%c0_29, %c0_30], %35 {strides = array<i32>} : memref<8x4xf32, #tpu.memory_space<vmem>>, vector<8x4xf32>,
    return
  }
  func.func @transform_0(%arg0: i32) -> (i32, i32) {
    %c0_i32 = arith.constant 0 : i32
    %c0_i32_0 = arith.constant 0 : i32
    return %arg0, %c0_i32 : i32, i32
  }
  func.func @transform_1(%arg0: i32) -> (i32, i32) {
    %c0_i32 = arith.constant 0 : i32
    %c0_i32_0 = arith.constant 0 : i32
    return %arg0, %c0_i32 : i32, i32
  }
  func.func @transform_2(%arg0: i32) -> (i32, i32) {
    %c0_i32 = arith.constant 0 : i32
    %c0_i32_0 = arith.constant 0 : i32
    %c0_i32_1 = arith.constant 0 : i32
    return %c0_i32, %c0_i32_0 : i32, i32
  }
  func.func @transform_3(%arg0: i32) -> (i32, i32) {
    %c0_i32 = arith.constant 0 : i32
    %c0_i32_0 = arith.constant 0 : i32
    %c0_i32_1 = arith.constant 0 : i32
    return %c0_i32, %c0_i32_0 : i32, i32
  }
  func.func @transform_4(%arg0: i32) -> (i32, i32) {
    %c0_i32 = arith.constant 0 : i32
    %c0_i32_0 = arith.constant 0 : i32
    %c0_i32_1 = arith.constant 0 : i32
    return %c0_i32, %c0_i32_0 : i32, i32
  }
  func.func @transform_5(%arg0: i32) -> (i32, i32) {
    %c0_i32 = arith.constant 0 : i32
    %c0_i32_0 = arith.constant 0 : i32
    %c0_i32_1 = arith.constant 0 : i32
    return %c0_i32, %c0_i32_0 : i32, i32
  }
  func.func @transform_6(%arg0: i32) -> (i32, i32) {
    %c0_i32 = arith.constant 0 : i32
    %c0_i32_0 = arith.constant 0 : i32
    %c0_i32_1 = arith.constant 0 : i32
    return %c0_i32, %c0_i32_0 : i32, i32
  }
  func.func @transform_7(%arg0: i32) -> (i32, i32) {
    %c0_i32 = arith.constant 0 : i32
    %c0_i32_0 = arith.constant 0 : i32
    %c0_i32_1 = arith.constant 0 : i32
    return %c0_i32, %c0_i32_0 : i32, i32
  }
  func.func @transform_8(%arg0: i32) -> (i32, i32) {
    %c0_i32 = arith.constant 0 : i32
    %c0_i32_0 = arith.constant 0 : i32
    %c0_i32_1 = arith.constant 0 : i32
    return %c0_i32, %c0_i32_0 : i32, i32
  }
  func.func @transform_9(%arg0: i32) -> (i32, i32) {
    %c0_i32 = arith.constant 0 : i32
    %c0_i32_0 = arith.constant 0 : i32
    %c0_i32_1 = arith.constant 0 : i32
    return %c0_i32, %c0_i32_0 : i32, i32
  }
  func.func @transform_10(%arg0: i32) -> (i32, i32) {
    %c0_i32 = arith.constant 0 : i32
    %c0_i32_0 = arith.constant 0 : i32
    %c0_i32_1 = arith.constant 0 : i32
    return %c0_i32, %c0_i32_0 : i32, i32
  }
  func.func @transform_11(%arg0: i32) -> (i32, i32) {
    %c0_i32 = arith.constant 0 : i32
    %c0_i32_0 = arith.constant 0 : i32
    return %arg0, %c0_i32 : i32, i32
  }
}

</mosaic_0001>

<llo_original>
// kernel: tpu_custom_call.1
$region0: #{tpu_custom_call.1}
  #allocation0 [shape = 'u32[]', space=smem, size = 0x4, offset = 0x4, fixed_abs, tag = 'smem constant byte address 0x4 - core index']
  #allocation1 [shape = 'u32[144,128]{1,0:T(1,128)}', space=vmem, size = 0x12000, scoped, tag = 'internal scratch']
  %s0 = inlined_call_operand.vmem [shape: f32[16,32], index: 0, kind: input, shape index: {}]
  %s1 = inlined_call_operand.hbm [shape: f32[16,32], index: 1, kind: input, shape index: {}]
  %s2 = inlined_call_operand.vmem [shape: f32[32,32], index: 2, kind: input, shape index: {}]
  %s3 = inlined_call_operand.vmem [shape: f32[32,32], index: 3, kind: input, shape index: {}]
  %s4 = inlined_call_operand.vmem [shape: f32[1,32], index: 4, kind: input, shape index: {}]
  %s5 = inlined_call_operand.vmem [shape: f32[32,16], index: 5, kind: input, shape index: {}]
  %s6 = inlined_call_operand.vmem [shape: f32[1,16], index: 6, kind: input, shape index: {}]
  %s7 = inlined_call_operand.vmem [shape: f32[16,8], index: 7, kind: input, shape index: {}]
  %s8 = inlined_call_operand.vmem [shape: f32[1,8], index: 8, kind: input, shape index: {}]
  %s9 = inlined_call_operand.vmem [shape: f32[8,4], index: 9, kind: input, shape index: {}]
  %s10 = inlined_call_operand.vmem [shape: f32[1,4], index: 10, kind: input, shape index: {}]
  %s11 = inlined_call_operand.vmem [shape: f32[16,4], index: 11, kind: output, shape index: {}]
  %s12 = sld [smem:[#allocation0]]
  $region81: #{tpu_custom_call.1} parent=0
    _
  %s14 = ssub.s32 1, %s12
  %s15 = scalar_select 0, %s14, %s12
  $region1: #{tpu_custom_call.1} parent=0
    #allocation2 [shape = 'u8[8192]{0}', space=vmem, size = 0x2000, scoped, tag = 'input window, operand 1']
    #allocation3 [shape = 's32[2]{0}', space=sflag, size = 0x8, scoped, tag = 'scoped memory for tpu_custom_call.1']
    %16 = vsyncpa [#allocation3], 0
    %s17 = scalar_lea.sflag [#allocation3], 1
    %18 = vsyncpa %s17, 0
    loop: start=0, step=1, limit=4
    $region2: #{tpu_custom_call.1} parent=1 // loop_pre_header
      _
    $region3: #{tpu_custom_call.1} parent=1 // loop_header
      %s20 = sphi 0, %s24
      %p21 = scmp.ge.s32.totalorder %s20, 4
      %s30 = sphi 0, %s32
      %s33 = sphi 0, %s30
      %s34 = sphi 0, %s33
      %s50 = sphi 0, %s34
      %s56 = sphi 0, %s58
      %s59 = sphi 0, %s56
      %s60 = sphi 0, %s59
      %s76 = sphi 0, %s60
      %s80 = sphi 0, %s80
      %s82 = sphi 0, %s80
      %s83 = sphi 0, %s82
      %s97 = sphi 0, %s83
      %s101 = sphi 0, %s101
      %s103 = sphi 0, %s101
      %s104 = sphi 0, %s103
      %s118 = sphi 0, %s104
      %s122 = sphi 0, %s122
      %s124 = sphi 0, %s122
      %s125 = sphi 0, %s124
      %s139 = sphi 0, %s125
      %s143 = sphi 0, %s143
      %s145 = sphi 0, %s143
      %s146 = sphi 0, %s145
      %s160 = sphi 0, %s146
      %s164 = sphi 0, %s164
      %s166 = sphi 0, %s164
      %s167 = sphi 0, %s166
      %s181 = sphi 0, %s167
      %s185 = sphi 0, %s185
      %s187 = sphi 0, %s185
      %s188 = sphi 0, %s187
      %s202 = sphi 0, %s188
      %s206 = sphi 0, %s206
      %s208 = sphi 0, %s206
      %s209 = sphi 0, %s208
      %s223 = sphi 0, %s209
      %s227 = sphi 0, %s227
      %s229 = sphi 0, %s227
      %s230 = sphi 0, %s229
      %s244 = sphi 0, %s230
      %s248 = sphi 0, %s248
      %s250 = sphi 0, %s248
      %s251 = sphi 0, %s250
      %s265 = sphi 0, %s251
      %s271 = sphi 0, %s273
      %s274 = sphi 0, %s271
      %s275 = sphi 0, %s274
      %s291 = sphi 0, %s275
    $region4: #{tpu_custom_call.1} parent=1 // loop_header_branch
      %23 = sbr.rel (%p21) target = $region8
    $region5: #{tpu_custom_call.1} parent=1 // loop_body
      %s25 = ssub.s32 %s20, 1
      %s26 = ssub.s32 %s20, 2
      %s27 = sadd.s32 %s20, 1
      %s28 = ssub.s32 %s20, %s27
      %p29 = scmp.eq.s32.totalorder %s28, 0
      %s31 = sadd.s32 %s30, 1
      %s32 = scalar_select %p29, %s30, %s31
      %p35 = pneg %p29
      %p36 = scmp.eq.s32.totalorder %s20, 1
      %p37 = por %p35, %p36
      %p38 = scmp.ne.s32.totalorder %s30, %s33
      %p39 = scmp.eq.s32.totalorder %s20, 0
      %p40 = por %p38, %p39
      %p41 = scmp.ne.s32.totalorder %s30, %s33
      %p42 = scmp.eq.s32.totalorder %s25, 1
      %p43 = por %p41, %p42
      %p44 = scmp.ne.s32.totalorder %s33, %s34
      %p45 = scmp.eq.s32.totalorder %s25, 0
      %p46 = por %p44, %p45
      %p47 = scmp.ne.s32.totalorder %s33, %s34
      %p48 = scmp.eq.s32.totalorder %s26, 1
      %p49 = por %p47, %p48
      %p51 = scmp.ne.s32.totalorder %s34, %s50
      %p52 = scmp.eq.s32.totalorder %s26, 0
      %p53 = por %p51, %p52
      %s54 = ssub.s32 %s20, %s27
      %p55 = scmp.eq.s32.totalorder %s54, 0
      %s57 = sadd.s32 %s56, 1
      %s58 = scalar_select %p55, %s56, %s57
      %p61 = pneg %p55
      %p62 = scmp.eq.s32.totalorder %s20, 1
      %p63 = por %p61, %p62
      %p64 = scmp.ne.s32.totalorder %s56, %s59
      %p65 = scmp.eq.s32.totalorder %s20, 0
      %p66 = por %p64, %p65
      %p67 = scmp.ne.s32.totalorder %s56, %s59
      %p68 = scmp.eq.s32.totalorder %s25, 1
      %p69 = por %p67, %p68
      %p70 = scmp.ne.s32.totalorder %s59, %s60
      %p71 = scmp.eq.s32.totalorder %s25, 0
      %p72 = por %p70, %p71
      %p73 = scmp.ne.s32.totalorder %s59, %s60
      %p74 = scmp.eq.s32.totalorder %s26, 1
      %p75 = por %p73, %p74
      %p77 = scmp.ne.s32.totalorder %s60, %s76
      %p78 = scmp.eq.s32.totalorder %s26, 0
      %p79 = por %p77, %p78
      %s81 = sadd.s32 %s80, 1
      %p84 = scmp.eq.s32.totalorder %s20, 1
      %p85 = scmp.ne.s32.totalorder %s80, %s82
      %p86 = scmp.eq.s32.totalorder %s20, 0
      %p87 = por %p85, %p86
      %p88 = scmp.ne.s32.totalorder %s80, %s82
      %p89 = scmp.eq.s32.totalorder %s25, 1
      %p90 = por %p88, %p89
      %p91 = scmp.ne.s32.totalorder %s82, %s83
      %p92 = scmp.eq.s32.totalorder %s25, 0
      %p93 = por %p91, %p92
      %p94 = scmp.ne.s32.totalorder %s82, %s83
      %p95 = scmp.eq.s32.totalorder %s26, 1
      %p96 = por %p94, %p95
      %p98 = scmp.ne.s32.totalorder %s83, %s97
      %p99 = scmp.eq.s32.totalorder %s26, 0
      %p100 = por %p98, %p99
      %s102 = sadd.s32 %s101, 1
      %p105 = scmp.eq.s32.totalorder %s20, 1
      %p106 = scmp.ne.s32.totalorder %s101, %s103
      %p107 = scmp.eq.s32.totalorder %s20, 0
      %p108 = por %p106, %p107
      %p109 = scmp.ne.s32.totalorder %s101, %s103
      %p110 = scmp.eq.s32.totalorder %s25, 1
      %p111 = por %p109, %p110
      %p112 = scmp.ne.s32.totalorder %s103, %s104
      %p113 = scmp.eq.s32.totalorder %s25, 0
      %p114 = por %p112, %p113
      %p115 = scmp.ne.s32.totalorder %s103, %s104
      %p116 = scmp.eq.s32.totalorder %s26, 1
      %p117 = por %p115, %p116
      %p119 = scmp.ne.s32.totalorder %s104, %s118
      %p120 = scmp.eq.s32.totalorder %s26, 0
      %p121 = por %p119, %p120
      %s123 = sadd.s32 %s122, 1
      %p126 = scmp.eq.s32.totalorder %s20, 1
      %p127 = scmp.ne.s32.totalorder %s122, %s124
      %p128 = scmp.eq.s32.totalorder %s20, 0
      %p129 = por %p127, %p128
      %p130 = scmp.ne.s32.totalorder %s122, %s124
      %p131 = scmp.eq.s32.totalorder %s25, 1
      %p132 = por %p130, %p131
      %p133 = scmp.ne.s32.totalorder %s124, %s125
      %p134 = scmp.eq.s32.totalorder %s25, 0
      %p135 = por %p133, %p134
      %p136 = scmp.ne.s32.totalorder %s124, %s125
      %p137 = scmp.eq.s32.totalorder %s26, 1
      %p138 = por %p136, %p137
      %p140 = scmp.ne.s32.totalorder %s125, %s139
      %p141 = scmp.eq.s32.totalorder %s26, 0
      %p142 = por %p140, %p141
      %s144 = sadd.s32 %s143, 1
      %p147 = scmp.eq.s32.totalorder %s20, 1
      %p148 = scmp.ne.s32.totalorder %s143, %s145
      %p149 = scmp.eq.s32.totalorder %s20, 0
      %p150 = por %p148, %p149
      %p151 = scmp.ne.s32.totalorder %s143, %s145
      %p152 = scmp.eq.s32.totalorder %s25, 1
      %p153 = por %p151, %p152
      %p154 = scmp.ne.s32.totalorder %s145, %s146
      %p155 = scmp.eq.s32.totalorder %s25, 0
      %p156 = por %p154, %p155
      %p157 = scmp.ne.s32.totalorder %s145, %s146
      %p158 = scmp.eq.s32.totalorder %s26, 1
      %p159 = por %p157, %p158
      %p161 = scmp.ne.s32.totalorder %s146, %s160
      %p162 = scmp.eq.s32.totalorder %s26, 0
      %p163 = por %p161, %p162
      %s165 = sadd.s32 %s164, 1
      %p168 = scmp.eq.s32.totalorder %s20, 1
      %p169 = scmp.ne.s32.totalorder %s164, %s166
      %p170 = scmp.eq.s32.totalorder %s20, 0
      %p171 = por %p169, %p170
      %p172 = scmp.ne.s32.totalorder %s164, %s166
      %p173 = scmp.eq.s32.totalorder %s25, 1
      %p174 = por %p172, %p173
      %p175 = scmp.ne.s32.totalorder %s166, %s167
      %p176 = scmp.eq.s32.totalorder %s25, 0
      %p177 = por %p175, %p176
      %p178 = scmp.ne.s32.totalorder %s166, %s167
      %p179 = scmp.eq.s32.totalorder %s26, 1
      %p180 = por %p178, %p179
      %p182 = scmp.ne.s32.totalorder %s167, %s181
      %p183 = scmp.eq.s32.totalorder %s26, 0
      %p184 = por %p182, %p183
      %s186 = sadd.s32 %s185, 1
      %p189 = scmp.eq.s32.totalorder %s20, 1
      %p190 = scmp.ne.s32.totalorder %s185, %s187
      %p191 = scmp.eq.s32.totalorder %s20, 0
      %p192 = por %p190, %p191
      %p193 = scmp.ne.s32.totalorder %s185, %s187
      %p194 = scmp.eq.s32.totalorder %s25, 1
      %p195 = por %p193, %p194
      %p196 = scmp.ne.s32.totalorder %s187, %s188
      %p197 = scmp.eq.s32.totalorder %s25, 0
      %p198 = por %p196, %p197
      %p199 = scmp.ne.s32.totalorder %s187, %s188
      %p200 = scmp.eq.s32.totalorder %s26, 1
      %p201 = por %p199, %p200
      %p203 = scmp.ne.s32.totalorder %s188, %s202
      %p204 = scmp.eq.s32.totalorder %s26, 0
      %p205 = por %p203, %p204
      %s207 = sadd.s32 %s206, 1
      %p210 = scmp.eq.s32.totalorder %s20, 1
      %p211 = scmp.ne.s32.totalorder %s206, %s208
      %p212 = scmp.eq.s32.totalorder %s20, 0
      %p213 = por %p211, %p212
      %p214 = scmp.ne.s32.totalorder %s206, %s208
      %p215 = scmp.eq.s32.totalorder %s25, 1
      %p216 = por %p214, %p215
      %p217 = scmp.ne.s32.totalorder %s208, %s209
      %p218 = scmp.eq.s32.totalorder %s25, 0
      %p219 = por %p217, %p218
      %p220 = scmp.ne.s32.totalorder %s208, %s209
      %p221 = scmp.eq.s32.totalorder %s26, 1
      %p222 = por %p220, %p221
      %p224 = scmp.ne.s32.totalorder %s209, %s223
      %p225 = scmp.eq.s32.totalorder %s26, 0
      %p226 = por %p224, %p225
      %s228 = sadd.s32 %s227, 1
      %p231 = scmp.eq.s32.totalorder %s20, 1
      %p232 = scmp.ne.s32.totalorder %s227, %s229
      %p233 = scmp.eq.s32.totalorder %s20, 0
      %p234 = por %p232, %p233
      %p235 = scmp.ne.s32.totalorder %s227, %s229
      %p236 = scmp.eq.s32.totalorder %s25, 1
      %p237 = por %p235, %p236
      %p238 = scmp.ne.s32.totalorder %s229, %s230
      %p239 = scmp.eq.s32.totalorder %s25, 0
      %p240 = por %p238, %p239
      %p241 = scmp.ne.s32.totalorder %s229, %s230
      %p242 = scmp.eq.s32.totalorder %s26, 1
      %p243 = por %p241, %p242
      %p245 = scmp.ne.s32.totalorder %s230, %s244
      %p246 = scmp.eq.s32.totalorder %s26, 0
      %p247 = por %p245, %p246
      %s249 = sadd.s32 %s248, 1
      %p252 = scmp.eq.s32.totalorder %s20, 1
      %p253 = scmp.ne.s32.totalorder %s248, %s250
      %p254 = scmp.eq.s32.totalorder %s20, 0
      %p255 = por %p253, %p254
      %p256 = scmp.ne.s32.totalorder %s248, %s250
      %p257 = scmp.eq.s32.totalorder %s25, 1
      %p258 = por %p256, %p257
      %p259 = scmp.ne.s32.totalorder %s250, %s251
      %p260 = scmp.eq.s32.totalorder %s25, 0
      %p261 = por %p259, %p260
      %p262 = scmp.ne.s32.totalorder %s250, %s251
      %p263 = scmp.eq.s32.totalorder %s26, 1
      %p264 = por %p262, %p263
      %p266 = scmp.ne.s32.totalorder %s251, %s265
      %p267 = scmp.eq.s32.totalorder %s26, 0
      %p268 = por %p266, %p267
      %s269 = ssub.s32 %s20, %s27
      %p270 = scmp.eq.s32.totalorder %s269, 0
      %s272 = sadd.s32 %s271, 1
      %s273 = scalar_select %p270, %s271, %s272
      %p276 = pneg %p270
      %p277 = scmp.eq.s32.totalorder %s20, 1
      %p278 = por %p276, %p277
      %p279 = scmp.ne.s32.totalorder %s271, %s274
      %p280 = scmp.eq.s32.totalorder %s20, 0
      %p281 = por %p279, %p280
      %p282 = scmp.ne.s32.totalorder %s271, %s274
      %p283 = scmp.eq.s32.totalorder %s25, 1
      %p284 = por %p282, %p283
      %p285 = scmp.ne.s32.totalorder %s274, %s275
      %p286 = scmp.eq.s32.totalorder %s25, 0
      %p287 = por %p285, %p286
      %p288 = scmp.ne.s32.totalorder %s274, %s275
      %p289 = scmp.eq.s32.totalorder %s26, 1
      %p290 = por %p288, %p289
      %p292 = scmp.ne.s32.totalorder %s275, %s291
      %p293 = scmp.eq.s32.totalorder %s26, 0
      %p294 = por %p292, %p293
      %p295 = scmp.le.s32.totalorder 1, %s20
      %p296 = scmp.lt.s32.totalorder %s20, 3
      %p297 = pnand %p295, %p296
      %p298 = pneg %p297
      // Predicated region
      $region9: #{tpu_custom_call.1} parent=5 // pred_check
        _
      $region10: #{tpu_custom_call.1} parent=5 // pred_check_branch
        %300 = sbr.rel (%p297) target = $region12
      $region11: #{tpu_custom_call.1} parent=5 // pred_region
        %s301 = ssub.s32 %s20, 1
        // Predicated region
        $region13: #{tpu_custom_call.1} parent=11 // pred_check
          %p302 = pneg %p93
        $region14: #{tpu_custom_call.1} parent=11 // pred_check_branch
          %304 = sbr.rel (%p302) target = $region16
        $region15: #{tpu_custom_call.1} parent=11 // pred_region
          _
        $region16: #{tpu_custom_call.1} parent=11 // pred_fallthru
          _
        // Predicated region
        $region17: #{tpu_custom_call.1} parent=11 // pred_check
          %p305 = pneg %p114
        $region18: #{tpu_custom_call.1} parent=11 // pred_check_branch
          %307 = sbr.rel (%p305) target = $region20
        $region19: #{tpu_custom_call.1} parent=11 // pred_region
          _
        $region20: #{tpu_custom_call.1} parent=11 // pred_fallthru
          _
        // Predicated region
        $region21: #{tpu_custom_call.1} parent=11 // pred_check
          %p308 = pneg %p135
        $region22: #{tpu_custom_call.1} parent=11 // pred_check_branch
          %310 = sbr.rel (%p308) target = $region24
        $region23: #{tpu_custom_call.1} parent=11 // pred_region
          _
        $region24: #{tpu_custom_call.1} parent=11 // pred_fallthru
          _
        // Predicated region
        $region25: #{tpu_custom_call.1} parent=11 // pred_check
          %p311 = pneg %p156
        $region26: #{tpu_custom_call.1} parent=11 // pred_check_branch
          %313 = sbr.rel (%p311) target = $region28
        $region27: #{tpu_custom_call.1} parent=11 // pred_region
          _
        $region28: #{tpu_custom_call.1} parent=11 // pred_fallthru
          _
        // Predicated region
        $region29: #{tpu_custom_call.1} parent=11 // pred_check
          %p314 = pneg %p177
        $region30: #{tpu_custom_call.1} parent=11 // pred_check_branch
          %316 = sbr.rel (%p314) target = $region32
        $region31: #{tpu_custom_call.1} parent=11 // pred_region
          _
        $region32: #{tpu_custom_call.1} parent=11 // pred_fallthru
          _
        // Predicated region
        $region33: #{tpu_custom_call.1} parent=11 // pred_check
          %p317 = pneg %p198
        $region34: #{tpu_custom_call.1} parent=11 // pred_check_branch
          %319 = sbr.rel (%p317) target = $region36
        $region35: #{tpu_custom_call.1} parent=11 // pred_region
          _
        $region36: #{tpu_custom_call.1} parent=11 // pred_fallthru
          _
        // Predicated region
        $region37: #{tpu_custom_call.1} parent=11 // pred_check
          %p320 = pneg %p219
        $region38: #{tpu_custom_call.1} parent=11 // pred_check_branch
          %322 = sbr.rel (%p320) target = $region40
        $region39: #{tpu_custom_call.1} parent=11 // pred_region
          _
        $region40: #{tpu_custom_call.1} parent=11 // pred_fallthru
          _
        // Predicated region
        $region41: #{tpu_custom_call.1} parent=11 // pred_check
          %p323 = pneg %p240
        $region42: #{tpu_custom_call.1} parent=11 // pred_check_branch
          %325 = sbr.rel (%p323) target = $region44
        $region43: #{tpu_custom_call.1} parent=11 // pred_region
          _
        $region44: #{tpu_custom_call.1} parent=11 // pred_fallthru
          _
        // Predicated region
        $region45: #{tpu_custom_call.1} parent=11 // pred_check
          %p326 = pneg %p261
        $region46: #{tpu_custom_call.1} parent=11 // pred_check_branch
          %328 = sbr.rel (%p326) target = $region48
        $region47: #{tpu_custom_call.1} parent=11 // pred_region
          _
        $region48: #{tpu_custom_call.1} parent=11 // pred_fallthru
          _
      $region12: #{tpu_custom_call.1} parent=5 // pred_fallthru
        _
      %p329 = scmp.lt.s32.totalorder %s20, 2
      // Predicated region
      $region49: #{tpu_custom_call.1} parent=5 // pred_check
        %p330 = pneg %p329
      $region50: #{tpu_custom_call.1} parent=5 // pred_check_branch
        %332 = sbr.rel (%p330) target = $region52
      $region51: #{tpu_custom_call.1} parent=5 // pred_region
        // Predicated region
        $region53: #{tpu_custom_call.1} parent=51 // pred_check
          %p333 = pneg %p40
        $region54: #{tpu_custom_call.1} parent=51 // pred_check_branch
          %335 = sbr.rel (%p333) target = $region56
        $region55: #{tpu_custom_call.1} parent=51 // pred_region
          %p336 = scmp.lt.s32.totalorder %s20, 1
          %s337 = scalar_select %p336, %s20, 1
          %s338 = smul.addr %s337, 8
          %s339 = scalar_lea.vmem %s0, %s338
        $region56: #{tpu_custom_call.1} parent=51 // pred_fallthru
          _
        // Predicated region
        $region57: #{tpu_custom_call.1} parent=51 // pred_check
          %p340 = pneg %p66
        $region58: #{tpu_custom_call.1} parent=51 // pred_check_branch
          %342 = sbr.rel (%p340) target = $region60
        $region59: #{tpu_custom_call.1} parent=51 // pred_region
          %s343 = sand.u32 %s56, 1
          %s344 = scalar_lea.sflag [#allocation3], %s343
          %s345 = sand.u32 %s56, 1
          %s346 = smul.addr %s345, 8
          %s347 = scalar_lea.vmem [#allocation2], %s346
          %s349 = ssub.s32 128, 128
          %350 = vsyncadd %s344, %s349
          %s351 = smul.addr %s20, 128
          %s352 = scalar_lea.hbm %s1, %s351
          %s354 = sshll.u32 %s347, 4
          %s355 = int_to_ptr.vmem [resolvable:$true] %s354
          %357 = dma.hbm_to_vmem [thread:$0]  %s352, 128, %s355, %s344
        $region60: #{tpu_custom_call.1} parent=51 // pred_fallthru
          _
      $region52: #{tpu_custom_call.1} parent=5 // pred_fallthru
        _
      %p358 = scmp.le.s32.totalorder 1, %s20
      %p359 = scmp.lt.s32.totalorder %s20, 3
      %p360 = pnand %p358, %p359
      %p361 = pneg %p360
      // Predicated region
      $region61: #{tpu_custom_call.1} parent=5 // pred_check
        _
      $region62: #{tpu_custom_call.1} parent=5 // pred_check_branch
        %363 = sbr.rel (%p360) target = $region64
      $region63: #{tpu_custom_call.1} parent=5 // pred_region
        %s364 = ssub.s32 %s20, 1
        %s365 = sand.u32 %s59, 1
        %s366 = scalar_lea.sflag [#allocation3], %s365
        %s367 = sand.u32 %s59, 1
        %s368 = smul.addr %s367, 8
        %s369 = scalar_lea.vmem [#allocation2], %s368
        // Predicated region
        $region65: #{tpu_custom_call.1} parent=63 // pred_check
          %p370 = pneg %p72
        $region66: #{tpu_custom_call.1} parent=63 // pred_check_branch
          %372 = sbr.rel (%p370) target = $region68
        $region67: #{tpu_custom_call.1} parent=63 // pred_region
          %373 = dma.done %s366, 128
        $region68: #{tpu_custom_call.1} parent=63 // pred_fallthru
          _
        %p374 = scmp.lt.s32.totalorder %s25, 1
        %s375 = scalar_select %p374, %s25, 1
        %s376 = smul.addr %s375, 8
        %s377 = scalar_lea.vmem %s0, %s376
        %p378 = pneg %p46
        %p379 = pneg %p43
        %s380 = sand.u32 %s59, 1
        %s381 = scalar_lea.sflag [#allocation3], %s380
        %s382 = sand.u32 %s59, 1
        %s383 = smul.addr %s382, 8
        %s384 = scalar_lea.vmem [#allocation2], %s383
        %p385 = pneg %p72
        %p386 = pneg %p69
        %p387 = pneg %p93
        %p388 = pneg %p90
        %p389 = pneg %p114
        %p390 = pneg %p111
        %p391 = pneg %p135
        %p392 = pneg %p132
        %p393 = pneg %p156
        %p394 = pneg %p153
        %p395 = pneg %p177
        %p396 = pneg %p174
        %p397 = pneg %p198
        %p398 = pneg %p195
        %p399 = pneg %p219
        %p400 = pneg %p216
        %p401 = pneg %p240
        %p402 = pneg %p237
        %p403 = pneg %p261
        %p404 = pneg %p258
        %p405 = pneg %p287
        %p406 = pneg %p284
        %p407 = scmp.lt.s32.totalorder %s25, 1
        %s408 = scalar_select %p407, %s25, 1
        %s409 = smul.addr %s408, 8
        %s410 = scalar_lea.vmem %s11, %s409
        %p411 = scmp.lt.s32.totalorder %s25, 1
        %s412 = scalar_select %p411, %s25, 1
        %s413 = smul.addr %s412, 8
        %s414 = scalar_lea.vmem %s0, %s413
        %p415 = scmp.lt.s32.totalorder %s25, 1
        %s416 = scalar_select %p415, %s25, 1
        %s417 = smul.addr %s416, 8
        %s418 = scalar_lea.vmem %s11, %s417
        %v419 = vld [vmem:[%s414] sm:$0xff]
        %v420 = vld [vmem:[%s2] sm:$0xff]
        %v421 = vld [vmem:[%s2 + $0x8] sm:$0xff]
        %v422 = vld [vmem:[%s2 + $0x10] sm:$0xff]
        %v423 = vld [vmem:[%s2 + $0x18] sm:$0xff]
        %v424 = vld [vmem:[%s369] sm:$0xff]
        %v425 = vld [vmem:[%s3] sm:$0xff]
        %v426 = vld [vmem:[%s3 + $0x8] sm:$0xff]
        %v427 = vld [vmem:[%s3 + $0x10] sm:$0xff]
        %v428 = vld [vmem:[%s3 + $0x18] sm:$0xff]
        %vm429 = vcmask 261120
        %v431 = vsel %vm429, %v424, 0
        %433 = vmatprep.subr.mxu0 0.0
        %434 = vmatpush1.msra.mxu0 0.0
        %435 = vmatprep.subr.mxu0 0.0
        %436 = vmatpush1.msra.mxu0 0.0
        %437 = vmatprep.subr.mxu0 0.0
        %438 = vmatpush1.msra.mxu0 0.0
        %439 = vmatprep.subr.mxu0 0.0
        %440 = vmatpush1.msra.mxu0 0.0
        %441 = vmatprep.subr.mxu0 0.0
        %442 = vmatpush1.msra.mxu0 0.0
        %443 = vmatprep.subr.mxu0 0.0
        %444 = vmatpush1.msra.mxu0 0.0
        %445 = vmatprep.subr.mxu0 0.0
        %446 = vmatpush1.msra.mxu0 0.0
        %447 = vmatprep.subr.mxu0 0.0
        %448 = vmatpush1.msra.mxu0 0.0
        %449 = vmatprep.subr.mxu0 0.0
        %450 = vmatpush1.msra.mxu0 0.0
        %451 = vmatprep.subr.mxu0 0.0
        %452 = vmatpush1.msra.mxu0 0.0
        %453 = vmatprep.subr.mxu0 0.0
        %454 = vmatpush1.msra.mxu0 0.0
        %455 = vmatprep.subr.mxu0 0.0
        %456 = vmatpush1.msra.mxu0 0.0
        %457 = vmatprep.subr.mxu0 0.0
        %458 = vmatpush1.msra.mxu0 %v428
        %459 = vmatprep.subr.mxu0 0.0
        %460 = vmatpush1.msra.mxu0 %v427
        %461 = vmatprep.subr.mxu0 0.0
        %462 = vmatpush1.msra.mxu0 %v426
        %463 = vmatprep.subr.mxu0 0.0
        %464 = vmatpush1.msra.mxu0 %v425
        %465 = vmatprep.subr.mxu0 0.0
        %466 = vmatpush2.msra.mxu0 0.0
        %467 = vmatprep.subr.mxu0 0.0
        %468 = vmatpush2.msra.mxu0 0.0
        %469 = vmatprep.subr.mxu0 0.0
        %470 = vmatpush2.msra.mxu0 0.0
        %471 = vmatprep.subr.mxu0 0.0
        %472 = vmatpush2.msra.mxu0 0.0
        %473 = vmatprep.subr.mxu0 0.0
        %474 = vmatpush2.msra.mxu0 0.0
        %475 = vmatprep.subr.mxu0 0.0
        %476 = vmatpush2.msra.mxu0 0.0
        %477 = vmatprep.subr.mxu0 0.0
        %478 = vmatpush2.msra.mxu0 0.0
        %479 = vmatprep.subr.mxu0 0.0
        %480 = vmatpush2.msra.mxu0 0.0
        %481 = vmatprep.subr.mxu0 0.0
        %482 = vmatpush2.msra.mxu0 0.0
        %483 = vmatprep.subr.mxu0 0.0
        %484 = vmatpush2.msra.mxu0 0.0
        %485 = vmatprep.subr.mxu0 0.0
        %486 = vmatpush2.msra.mxu0 0.0
        %487 = vmatprep.subr.mxu0 0.0
        %488 = vmatpush2.msra.mxu0 0.0
        %489 = vmatprep.subr.mxu0 0.0
        %490 = vmatpush2.msra.mxu0 0.0
        %491 = vmatprep.subr.mxu0 0.0
        %492 = vmatpush2.msra.mxu0 0.0
        %493 = vmatprep.subr.mxu0 0.0
        %494 = vmatpush2.msra.mxu0 0.0
        %495 = vmatprep.subr.mxu0 0.0
        %496 = vmatpush2.msra.mxu0 0.0
        %497 = vmatprep.mubr.f32.mxu0 0.0
        %498 = vmatmul.mubr.f32.gmra.mxu0 %v431
        %v499 = vpop.f32.mrf.mxu0
        %v500 = vadd.f32 0.0, %v499
        %v501 = vpop.f32.mrf.mxu0
        %502 = vdwg.mxu0
        %v504 = vsel %vm429, %v419, 0
        %506 = vmatprep.subr.mxu0 0.0
        %507 = vmatpush1.msra.mxu0 0.0
        %508 = vmatprep.subr.mxu0 0.0
        %509 = vmatpush1.msra.mxu0 0.0
        %510 = vmatprep.subr.mxu0 0.0
        %511 = vmatpush1.msra.mxu0 0.0
        %512 = vmatprep.subr.mxu0 0.0
        %513 = vmatpush1.msra.mxu0 0.0
        %514 = vmatprep.subr.mxu0 0.0
        %515 = vmatpush1.msra.mxu0 0.0
        %516 = vmatprep.subr.mxu0 0.0
        %517 = vmatpush1.msra.mxu0 0.0
        %518 = vmatprep.subr.mxu0 0.0
        %519 = vmatpush1.msra.mxu0 0.0
        %520 = vmatprep.subr.mxu0 0.0
        %521 = vmatpush1.msra.mxu0 0.0
        %522 = vmatprep.subr.mxu0 0.0
        %523 = vmatpush1.msra.mxu0 0.0
        %524 = vmatprep.subr.mxu0 0.0
        %525 = vmatpush1.msra.mxu0 0.0
        %526 = vmatprep.subr.mxu0 0.0
        %527 = vmatpush1.msra.mxu0 0.0
        %528 = vmatprep.subr.mxu0 0.0
        %529 = vmatpush1.msra.mxu0 0.0
        %530 = vmatprep.subr.mxu0 0.0
        %531 = vmatpush1.msra.mxu0 %v423
        %532 = vmatprep.subr.mxu0 0.0
        %533 = vmatpush1.msra.mxu0 %v422
        %534 = vmatprep.subr.mxu0 0.0
        %535 = vmatpush1.msra.mxu0 %v421
        %536 = vmatprep.subr.mxu0 0.0
        %537 = vmatpush1.msra.mxu0 %v420
        %538 = vmatprep.subr.mxu0 0.0
        %539 = vmatpush2.msra.mxu0 0.0
        %540 = vmatprep.subr.mxu0 0.0
        %541 = vmatpush2.msra.mxu0 0.0
        %542 = vmatprep.subr.mxu0 0.0
        %543 = vmatpush2.msra.mxu0 0.0
        %544 = vmatprep.subr.mxu0 0.0
        %545 = vmatpush2.msra.mxu0 0.0
        %546 = vmatprep.subr.mxu0 0.0
        %547 = vmatpush2.msra.mxu0 0.0
        %548 = vmatprep.subr.mxu0 0.0
        %549 = vmatpush2.msra.mxu0 0.0
        %550 = vmatprep.subr.mxu0 0.0
        %551 = vmatpush2.msra.mxu0 0.0
        %552 = vmatprep.subr.mxu0 0.0
        %553 = vmatpush2.msra.mxu0 0.0
        %554 = vmatprep.subr.mxu0 0.0
        %555 = vmatpush2.msra.mxu0 0.0
        %556 = vmatprep.subr.mxu0 0.0
        %557 = vmatpush2.msra.mxu0 0.0
        %558 = vmatprep.subr.mxu0 0.0
        %559 = vmatpush2.msra.mxu0 0.0
        %560 = vmatprep.subr.mxu0 0.0
        %561 = vmatpush2.msra.mxu0 0.0
        %562 = vmatprep.subr.mxu0 0.0
        %563 = vmatpush2.msra.mxu0 0.0
        %564 = vmatprep.subr.mxu0 0.0
        %565 = vmatpush2.msra.mxu0 0.0
        %566 = vmatprep.subr.mxu0 0.0
        %567 = vmatpush2.msra.mxu0 0.0
        %568 = vmatprep.subr.mxu0 0.0
        %569 = vmatpush2.msra.mxu0 0.0
        %570 = vmatprep.mubr.f32.mxu0 0.0
        %571 = vmatmul.mubr.f32.gmra.mxu0 %v504
        %v572 = vpop.f32.mrf.mxu0
        %v573 = vadd.f32 %v500, %v572
        %v574 = vpop.f32.mrf.mxu0
        %575 = vdwg.mxu0
        %v576 = vld [vmem:[%s4] sm:$0x1]
        %v578 = vlaneseq
        %v579 = vshrl.u32 %v578, 7
        %v580 = vsub.s32 0, %v579
        %v581 = vrot.slane %v576, %v580
        %v583 = vadd.f32 %v573, %v581
        %v584 = vmax.f32 %v583, 0.0
        %v585 = vld [vmem:[%s5] sm:$0xff]
        %v586 = vld [vmem:[%s5 + $0x8] sm:$0xff]
        %v587 = vld [vmem:[%s5 + $0x10] sm:$0xff]
        %v588 = vld [vmem:[%s5 + $0x18] sm:$0xff]
        %v589 = vld [vmem:[%s6] sm:$0x1]
        %v591 = vlaneseq
        %v592 = vshrl.u32 %v591, 7
        %v593 = vsub.s32 0, %v592
        %v594 = vrot.slane %v589, %v593
        %v597 = vsel %vm429, %v584, 0
        %599 = vmatprep.subr.mxu0 0.0
        %600 = vmatpush1.msra.mxu0 0.0
        %601 = vmatprep.subr.mxu0 0.0
        %602 = vmatpush1.msra.mxu0 0.0
        %603 = vmatprep.subr.mxu0 0.0
        %604 = vmatpush1.msra.mxu0 0.0
        %605 = vmatprep.subr.mxu0 0.0
        %606 = vmatpush1.msra.mxu0 0.0
        %607 = vmatprep.subr.mxu0 0.0
        %608 = vmatpush1.msra.mxu0 0.0
        %609 = vmatprep.subr.mxu0 0.0
        %610 = vmatpush1.msra.mxu0 0.0
        %611 = vmatprep.subr.mxu0 0.0
        %612 = vmatpush1.msra.mxu0 0.0
        %613 = vmatprep.subr.mxu0 0.0
        %614 = vmatpush1.msra.mxu0 0.0
        %615 = vmatprep.subr.mxu0 0.0
        %616 = vmatpush1.msra.mxu0 0.0
        %617 = vmatprep.subr.mxu0 0.0
        %618 = vmatpush1.msra.mxu0 0.0
        %619 = vmatprep.subr.mxu0 0.0
        %620 = vmatpush1.msra.mxu0 0.0
        %621 = vmatprep.subr.mxu0 0.0
        %622 = vmatpush1.msra.mxu0 0.0
        %623 = vmatprep.subr.mxu0 0.0
        %624 = vmatpush1.msra.mxu0 %v588
        %625 = vmatprep.subr.mxu0 0.0
        %626 = vmatpush1.msra.mxu0 %v587
        %627 = vmatprep.subr.mxu0 0.0
        %628 = vmatpush1.msra.mxu0 %v586
        %629 = vmatprep.subr.mxu0 0.0
        %630 = vmatpush1.msra.mxu0 %v585
        %631 = vmatprep.subr.mxu0 0.0
        %632 = vmatpush2.msra.mxu0 0.0
        %633 = vmatprep.subr.mxu0 0.0
        %634 = vmatpush2.msra.mxu0 0.0
        %635 = vmatprep.subr.mxu0 0.0
        %636 = vmatpush2.msra.mxu0 0.0
        %637 = vmatprep.subr.mxu0 0.0
        %638 = vmatpush2.msra.mxu0 0.0
        %639 = vmatprep.subr.mxu0 0.0
        %640 = vmatpush2.msra.mxu0 0.0
        %641 = vmatprep.subr.mxu0 0.0
        %642 = vmatpush2.msra.mxu0 0.0
        %643 = vmatprep.subr.mxu0 0.0
        %644 = vmatpush2.msra.mxu0 0.0
        %645 = vmatprep.subr.mxu0 0.0
        %646 = vmatpush2.msra.mxu0 0.0
        %647 = vmatprep.subr.mxu0 0.0
        %648 = vmatpush2.msra.mxu0 0.0
        %649 = vmatprep.subr.mxu0 0.0
        %650 = vmatpush2.msra.mxu0 0.0
        %651 = vmatprep.subr.mxu0 0.0
        %652 = vmatpush2.msra.mxu0 0.0
        %653 = vmatprep.subr.mxu0 0.0
        %654 = vmatpush2.msra.mxu0 0.0
        %655 = vmatprep.subr.mxu0 0.0
        %656 = vmatpush2.msra.mxu0 0.0
        %657 = vmatprep.subr.mxu0 0.0
        %658 = vmatpush2.msra.mxu0 0.0
        %659 = vmatprep.subr.mxu0 0.0
        %660 = vmatpush2.msra.mxu0 0.0
        %661 = vmatprep.subr.mxu0 0.0
        %662 = vmatpush2.msra.mxu0 0.0
        %663 = vmatprep.mubr.f32.mxu0 0.0
        %664 = vmatmul.mubr.f32.gmra.mxu0 %v597
        %v665 = vpop.f32.mrf.mxu0
        %v666 = vadd.f32 %v594, %v665
        %v667 = vpop.f32.mrf.mxu0
        %668 = vdwg.mxu0
        %v669 = vmax.f32 %v666, 0.0
        %v670 = vld [vmem:[%s7] sm:$0xff]
        %v671 = vld [vmem:[%s7 + $0x8] sm:$0xff]
        %v672 = vld [vmem:[%s8] sm:$0x1]
        %v674 = vlaneseq
        %v675 = vshrl.u32 %v674, 7
        %v676 = vsub.s32 0, %v675
        %v677 = vrot.slane %v672, %v676
        %vm679 = vcmask 130048
        %v681 = vsel %vm679, %v669, 0
        %683 = vmatprep.subr.mxu0 0.0
        %684 = vmatpush1.msra.mxu0 0.0
        %685 = vmatprep.subr.mxu0 0.0
        %686 = vmatpush1.msra.mxu0 0.0
        %687 = vmatprep.subr.mxu0 0.0
        %688 = vmatpush1.msra.mxu0 0.0
        %689 = vmatprep.subr.mxu0 0.0
        %690 = vmatpush1.msra.mxu0 0.0
        %691 = vmatprep.subr.mxu0 0.0
        %692 = vmatpush1.msra.mxu0 0.0
        %693 = vmatprep.subr.mxu0 0.0
        %694 = vmatpush1.msra.mxu0 0.0
        %695 = vmatprep.subr.mxu0 0.0
        %696 = vmatpush1.msra.mxu0 0.0
        %697 = vmatprep.subr.mxu0 0.0
        %698 = vmatpush1.msra.mxu0 0.0
        %699 = vmatprep.subr.mxu0 0.0
        %700 = vmatpush1.msra.mxu0 0.0
        %701 = vmatprep.subr.mxu0 0.0
        %702 = vmatpush1.msra.mxu0 0.0
        %703 = vmatprep.subr.mxu0 0.0
        %704 = vmatpush1.msra.mxu0 0.0
        %705 = vmatprep.subr.mxu0 0.0
        %706 = vmatpush1.msra.mxu0 0.0
        %707 = vmatprep.subr.mxu0 0.0
        %708 = vmatpush1.msra.mxu0 0.0
        %709 = vmatprep.subr.mxu0 0.0
        %710 = vmatpush1.msra.mxu0 0.0
        %711 = vmatprep.subr.mxu0 0.0
        %712 = vmatpush1.msra.mxu0 %v671
        %713 = vmatprep.subr.mxu0 0.0
        %714 = vmatpush1.msra.mxu0 %v670
        %715 = vmatprep.subr.mxu0 0.0
        %716 = vmatpush2.msra.mxu0 0.0
        %717 = vmatprep.subr.mxu0 0.0
        %718 = vmatpush2.msra.mxu0 0.0
        %719 = vmatprep.subr.mxu0 0.0
        %720 = vmatpush2.msra.mxu0 0.0
        %721 = vmatprep.subr.mxu0 0.0
        %722 = vmatpush2.msra.mxu0 0.0
        %723 = vmatprep.subr.mxu0 0.0
        %724 = vmatpush2.msra.mxu0 0.0
        %725 = vmatprep.subr.mxu0 0.0
        %726 = vmatpush2.msra.mxu0 0.0
        %727 = vmatprep.subr.mxu0 0.0
        %728 = vmatpush2.msra.mxu0 0.0
        %729 = vmatprep.subr.mxu0 0.0
        %730 = vmatpush2.msra.mxu0 0.0
        %731 = vmatprep.subr.mxu0 0.0
        %732 = vmatpush2.msra.mxu0 0.0
        %733 = vmatprep.subr.mxu0 0.0
        %734 = vmatpush2.msra.mxu0 0.0
        %735 = vmatprep.subr.mxu0 0.0
        %736 = vmatpush2.msra.mxu0 0.0
        %737 = vmatprep.subr.mxu0 0.0
        %738 = vmatpush2.msra.mxu0 0.0
        %739 = vmatprep.subr.mxu0 0.0
        %740 = vmatpush2.msra.mxu0 0.0
        %741 = vmatprep.subr.mxu0 0.0
        %742 = vmatpush2.msra.mxu0 0.0
        %743 = vmatprep.subr.mxu0 0.0
        %744 = vmatpush2.msra.mxu0 0.0
        %745 = vmatprep.subr.mxu0 0.0
        %746 = vmatpush2.msra.mxu0 0.0
        %747 = vmatprep.mubr.f32.mxu0 0.0
        %748 = vmatmul.mubr.f32.gmra.mxu0 %v681
        %v749 = vpop.f32.mrf.mxu0
        %v750 = vadd.f32 %v677, %v749
        %v751 = vpop.f32.mrf.mxu0
        %752 = vdwg.mxu0
        %v753 = vmax.f32 %v750, 0.0
        %v754 = vld [vmem:[%s9] sm:$0xff]
        %v755 = vld [vmem:[%s10] sm:$0x1]
        %v757 = vlaneseq
        %v758 = vshrl.u32 %v757, 7
        %v759 = vsub.s32 0, %v758
        %v760 = vrot.slane %v755, %v759
        %vm762 = vcmask 64512
        %v764 = vsel %vm762, %v753, 0
        %766 = vmatprep.subr.mxu0 0.0
        %767 = vmatpush1.msra.mxu0 0.0
        %768 = vmatprep.subr.mxu0 0.0
        %769 = vmatpush1.msra.mxu0 0.0
        %770 = vmatprep.subr.mxu0 0.0
        %771 = vmatpush1.msra.mxu0 0.0
        %772 = vmatprep.subr.mxu0 0.0
        %773 = vmatpush1.msra.mxu0 0.0
        %774 = vmatprep.subr.mxu0 0.0
        %775 = vmatpush1.msra.mxu0 0.0
        %776 = vmatprep.subr.mxu0 0.0
        %777 = vmatpush1.msra.mxu0 0.0
        %778 = vmatprep.subr.mxu0 0.0
        %779 = vmatpush1.msra.mxu0 0.0
        %780 = vmatprep.subr.mxu0 0.0
        %781 = vmatpush1.msra.mxu0 0.0
        %782 = vmatprep.subr.mxu0 0.0
        %783 = vmatpush1.msra.mxu0 0.0
        %784 = vmatprep.subr.mxu0 0.0
        %785 = vmatpush1.msra.mxu0 0.0
        %786 = vmatprep.subr.mxu0 0.0
        %787 = vmatpush1.msra.mxu0 0.0
        %788 = vmatprep.subr.mxu0 0.0
        %789 = vmatpush1.msra.mxu0 0.0
        %790 = vmatprep.subr.mxu0 0.0
        %791 = vmatpush1.msra.mxu0 0.0
        %792 = vmatprep.subr.mxu0 0.0
        %793 = vmatpush1.msra.mxu0 0.0
        %794 = vmatprep.subr.mxu0 0.0
        %795 = vmatpush1.msra.mxu0 0.0
        %796 = vmatprep.subr.mxu0 0.0
        %797 = vmatpush1.msra.mxu0 %v754
        %798 = vmatprep.subr.mxu0 0.0
        %799 = vmatpush2.msra.mxu0 0.0
        %800 = vmatprep.subr.mxu0 0.0
        %801 = vmatpush2.msra.mxu0 0.0
        %802 = vmatprep.subr.mxu0 0.0
        %803 = vmatpush2.msra.mxu0 0.0
        %804 = vmatprep.subr.mxu0 0.0
        %805 = vmatpush2.msra.mxu0 0.0
        %806 = vmatprep.subr.mxu0 0.0
        %807 = vmatpush2.msra.mxu0 0.0
        %808 = vmatprep.subr.mxu0 0.0
        %809 = vmatpush2.msra.mxu0 0.0
        %810 = vmatprep.subr.mxu0 0.0
        %811 = vmatpush2.msra.mxu0 0.0
        %812 = vmatprep.subr.mxu0 0.0
        %813 = vmatpush2.msra.mxu0 0.0
        %814 = vmatprep.subr.mxu0 0.0
        %815 = vmatpush2.msra.mxu0 0.0
        %816 = vmatprep.subr.mxu0 0.0
        %817 = vmatpush2.msra.mxu0 0.0
        %818 = vmatprep.subr.mxu0 0.0
        %819 = vmatpush2.msra.mxu0 0.0
        %820 = vmatprep.subr.mxu0 0.0
        %821 = vmatpush2.msra.mxu0 0.0
        %822 = vmatprep.subr.mxu0 0.0
        %823 = vmatpush2.msra.mxu0 0.0
        %824 = vmatprep.subr.mxu0 0.0
        %825 = vmatpush2.msra.mxu0 0.0
        %826 = vmatprep.subr.mxu0 0.0
        %827 = vmatpush2.msra.mxu0 0.0
        %828 = vmatprep.subr.mxu0 0.0
        %829 = vmatpush2.msra.mxu0 0.0
        %830 = vmatprep.mubr.f32.mxu0 0.0
        %831 = vmatmul.mubr.f32.gmra.mxu0 %v764
        %v832 = vpop.f32.mrf.mxu0
        %v833 = vadd.f32 %v760, %v832
        %v834 = vpop.f32.mrf.mxu0
        %835 = vdwg.mxu0
        %v836 = vxor.u32 %v833, 2147483648
        %v837 = vmul.f32 %v836, 1.442695
        %v838 = vpow.pop %v837
        %v839 = vadd.f32 %v838, 1.0
        %v840 = vrcp.pop %v839
        %v841 = vmul.f32 1.0, %v840
        %vm842 = vcmask 31744
        %843 = vst.msk [vmem:[%s418] sm:$0xff] %vm842, %v841
        %p844 = scmp.lt.s32.totalorder %s25, 1
        %s845 = scalar_select %p844, %s25, 1
        %s846 = smul.addr %s845, 8
        %s847 = scalar_lea.vmem %s11, %s846
        // Predicated region
        $region69: #{tpu_custom_call.1} parent=63 // pred_check
          %p848 = pneg %p284
        $region70: #{tpu_custom_call.1} parent=63 // pred_check_branch
          %850 = sbr.rel (%p848) target = $region72
        $region71: #{tpu_custom_call.1} parent=63 // pred_region
          _
        $region72: #{tpu_custom_call.1} parent=63 // pred_fallthru
          _
      $region64: #{tpu_custom_call.1} parent=5 // pred_fallthru
        _
      %p851 = scmp.le.s32.totalorder 2, %s20
      // Predicated region
      $region73: #{tpu_custom_call.1} parent=5 // pred_check
        %p852 = pneg %p851
      $region74: #{tpu_custom_call.1} parent=5 // pred_check_branch
        %854 = sbr.rel (%p852) target = $region76
      $region75: #{tpu_custom_call.1} parent=5 // pred_region
        %s855 = ssub.s32 %s20, 2
        // Predicated region
        $region77: #{tpu_custom_call.1} parent=75 // pred_check
          %p856 = pneg %p290
        $region78: #{tpu_custom_call.1} parent=75 // pred_check_branch
          %858 = sbr.rel (%p856) target = $region80
        $region79: #{tpu_custom_call.1} parent=75 // pred_region
          %p859 = scmp.lt.s32.totalorder %s26, 1
          %s860 = scalar_select %p859, %s26, 1
          %s861 = smul.addr %s860, 8
          %s862 = scalar_lea.vmem %s11, %s861
        $region80: #{tpu_custom_call.1} parent=75 // pred_fallthru
          _
      $region76: #{tpu_custom_call.1} parent=5 // pred_fallthru
        _
    $region6: #{tpu_custom_call.1} parent=1 // loop_footer
      %s24 = sadd.s32 1, %s20
    $region7: #{tpu_custom_call.1} parent=1 // loop_footer_branch
      %19 = sbr.rel target = $region3
    $region8: #{tpu_custom_call.1} parent=1 // loop_exit
      _
    %863 = vsyncpa [#allocation3], 1
    %s864 = scalar_lea.sflag [#allocation3], 1
    %865 = vsyncpa %s864, 1

</llo_original>
